<compile_context>
chip_gen: v7x
topology: tpu7x:2x2x1
jax: 0.10.0
libtpu: 0.0.40
codegen_flags: <defaults>
</compile_context>

<pallas_src>
import functools
import math

import jax
import jax.numpy as jnp
from jax import lax
from jax.experimental import pallas as pl
from jax.experimental.pallas import tpu as pltpu


def _enhancer_kernel(x_ref, w_ref, shift_ref, o_ref, pad_ref, *, approx_gelu):
    # x_ref:     (Bt, Hp, Wp, Dt)       input tile (native dtype)
    # w_ref:     (9, Dt)                depthwise taps, BN scale folded, f32
    # shift_ref: (1, Dt)                folded conv-bias + BN shift, f32
    # o_ref:     (Bt, Hp, Wp, Dt)       output tile
    # pad_ref:   (Bt, Hp+2, Wp+2, Dt)   VMEM scratch with a zero halo
    Bt, Hp, Wp, Dt = o_ref.shape
    dt = pad_ref.dtype

    # Re-zero only the halo border (cheap, lane-dense on the last axis); the
    # interior is fully overwritten below. Doing it every step keeps the
    # kernel correct no matter how the parallel grid is split across cores.
    zrow = jnp.zeros((Bt, 1, Wp + 2, Dt), dt)
    pad_ref[:, 0:1, :, :] = zrow
    pad_ref[:, Hp + 1:Hp + 2, :, :] = zrow
    zcol = jnp.zeros((Bt, Hp + 2, 1, Dt), dt)
    pad_ref[:, :, 0:1, :] = zcol
    pad_ref[:, :, Wp + 1:Wp + 2, :] = zcol

    # One interior store; all 9 taps then read shifted views of this ref.
    pad_ref[:, 1:Hp + 1, 1:Wp + 1, :] = x_ref[...]

    w_all = w_ref[...]        # (9, Dt) f32 -- single load, sliced per tap
    shift = shift_ref[0]      # (Dt,)  f32

    # f32 accumulation; multiplying by the f32 tap promotes the (possibly
    # bf16) input without a separate full-tile astype. The first tap product
    # initializes the accumulator (no zero-fill + add pass).
    acc = pad_ref[:, 0:Hp, 0:Wp, :] * w_all[0]
    for t in range(1, 9):
        ky, kx = t // 3, t % 3
        acc = acc + pad_ref[:, ky:ky + Hp, kx:kx + Wp, :] * w_all[t]

    y = acc + shift
    if approx_gelu:
        # tanh approximation: runs on the EUP slot; NOT bit-identical to
        # torch.nn.GELU() (exact erf).
        c = math.sqrt(2.0 / math.pi)
        y = 0.5 * y * (1.0 + jnp.tanh(c * (y + 0.044715 * (y * y * y))))
    else:
        # Exact GELU (matches torch.nn.GELU default).
        y = 0.5 * y * (1.0 + lax.erf(y * (1.0 / math.sqrt(2.0))))
    o_ref[...] = y.astype(o_ref.dtype)


def _largest_divisor_leq(n, cap):
    cap = max(1, min(n, int(cap)))
    for d in range(cap, 0, -1):
        if n % d == 0:
            return d
    return 1


def spatial_conv_enhancer(x, Hp, Wp, conv_w, conv_b, bn_gamma, bn_beta,
                          bn_mean, bn_var, eps=1e-5, approx_gelu=False):
    """x: (B, N, D) with N == Hp * Wp. Returns (B, N, D)."""
    B, N, D = x.shape
    assert N == Hp * Wp

    # Fold eval-mode BN into the depthwise taps (scale) and a shift.
    inv_std = 1.0 / jnp.sqrt(bn_var.astype(jnp.float32) + eps)
    scale = bn_gamma.astype(jnp.float32) * inv_std                        # (D,)
    w_taps = conv_w.reshape(D, 9).T.astype(jnp.float32) * scale[None, :]  # (9,D)
    shift = ((conv_b.astype(jnp.float32) - bn_mean.astype(jnp.float32)) * scale
             + bn_beta.astype(jnp.float32)).reshape(1, D)

    # Channels-last NHWC so D rides the 128-wide lane axis; same token<->pixel
    # mapping as the PyTorch NCHW transpose/reshape (n = h*Wp + w).
    x_img = x.reshape(B, Hp, Wp, D)

    # Lane-dense channel dim: pad D up to a multiple of 128. Padded channels
    # have zero taps/shift -> zero output, sliced off at the end.
    D_pad = ((D + 127) // 128) * 128
    if D_pad != D:
        pad_d = D_pad - D
        x_img = jnp.pad(x_img, ((0, 0), (0, 0), (0, 0), (0, pad_d)))
        w_taps = jnp.pad(w_taps, ((0, 0), (0, pad_d)))
        shift = jnp.pad(shift, ((0, 0), (0, pad_d)))

    # ---- tile selection -----------------------------------------------------
    # Channel tile: largest power-of-two multiple of 128 dividing D_pad,
    # capped at 512 (keeps tiles in budget on v7x's smaller VMEM).
    Dt = 128
    while Dt * 2 <= min(D_pad, 512) and D_pad % (Dt * 2) == 0:
        Dt *= 2

    # Batch tile: target ~2 MiB of input per grid step (amortize the ~0.35 us
    # per-step overhead, v5e/v6e memory-bound regime).
    itemsize = jnp.dtype(x.dtype).itemsize
    per_b = Hp * Wp * Dt * itemsize
    Bt = _largest_divisor_leq(B, max(1, (2 << 20) // max(per_b, 1)))

    # Guarantee enough grid steps: >= 2 for megacore sharding on v7x, up to 8
    # for pipelining -- bounded by what's achievable at Dt=128, Bt=1.
    def _steps(bt, dt):
        return (B // bt) * (D_pad // dt)

    min_steps = min(8, B * (D_pad // 128))
    while _steps(Bt, Dt) < min_steps and Bt > 1:
        Bt = _largest_divisor_leq(B, Bt - 1)
    while _steps(Bt, Dt) < min_steps and Dt > 128:
        Dt //= 2

    grid = (B // Bt, D_pad // Dt)

    # VMEM budget: double-buffered in/out tiles + halo scratch + f32
    # accumulator temporaries, with headroom, clamped to the chip's capacity.
    w_round = ((Wp + 2 + 7) // 8) * 8
    tile_b = Bt * Hp * Wp * Dt * itemsize
    pad_b = Bt * (Hp + 2) * w_round * Dt * itemsize
    acc_b = Bt * Hp * Wp * Dt * 4
    vmem_est = 2 * 2 * max(tile_b, acc_b) + pad_b + 4 * acc_b + 16 * Dt * 4
    try:
        vmem_cap = int(pltpu.get_tpu_info().vmem_capacity_bytes)
    except Exception:
        vmem_cap = 64 << 20   # conservative (v7x per-TC) fallback
    vmem_limit = int(min(max(int(vmem_est * 1.5), 8 << 20),
                         int(vmem_cap * 0.75)))
    # -------------------------------------------------------------------------

    out = pl.pallas_call(
        functools.partial(_enhancer_kernel, approx_gelu=approx_gelu),
        out_shape=jax.ShapeDtypeStruct((B, Hp, Wp, D_pad), x.dtype),
        grid_spec=pltpu.PrefetchScalarGridSpec(
            num_scalar_prefetch=0,
            grid=grid,
            in_specs=[
                pl.BlockSpec((Bt, Hp, Wp, Dt), lambda b, c: (b, 0, 0, c)),
                pl.BlockSpec((9, Dt), lambda b, c: (0, c)),
                pl.BlockSpec((1, Dt), lambda b, c: (0, c)),
            ],
            out_specs=pl.BlockSpec((Bt, Hp, Wp, Dt), lambda b, c: (b, 0, 0, c)),
            scratch_shapes=[pltpu.VMEM((Bt, Hp + 2, Wp + 2, Dt), x.dtype)],
        ),
        compiler_params=pltpu.CompilerParams(
            dimension_semantics=("parallel", "parallel"),
            vmem_limit_bytes=vmem_limit),
    )(x_img, w_taps, shift)

    if D_pad != D:
        out = out[..., :D]
    return out.reshape(B, N, D)


def _reference(x, Hp, Wp, conv_w, conv_b, bn_gamma, bn_beta, bn_mean, bn_var,
               eps=1e-5):
    """Pure-JAX reference (lax depthwise conv, NHWC, eval-mode BN, erf GELU)."""
    B, N, D = x.shape
    x_img = x.reshape(B, Hp, Wp, D)
    rhs = jnp.transpose(conv_w, (2, 3, 1, 0))                     # (3, 3, 1, D)
    y = lax.conv_general_dilated(
        x_img, rhs, window_strides=(1, 1), padding="SAME",
        dimension_numbers=("NHWC", "HWIO", "NHWC"),
        feature_group_count=D) + conv_b
    inv_std = 1.0 / jnp.sqrt(bn_var + eps)
    y = (y - bn_mean) * (bn_gamma * inv_std) + bn_beta
    y = 0.5 * y * (1.0 + lax.erf(y / math.sqrt(2.0)))
    return y.reshape(B, N, D)


if __name__ == "__main__":
    # Small shapes: B=2, D=128 (lane-aligned embed dim), Hp=Wp=8 -> N=64.
    B, Hp, Wp, D = 2, 8, 8, 128
    N = Hp * Wp

    key = jax.random.PRNGKey(0)
    k_x, k_w, k_b, k_g, k_bt, k_m, k_v = jax.random.split(key, 7)

    x = jax.random.normal(k_x, (B, N, D), dtype=jnp.float32)
    # Deterministic synthetic parameters (shapes follow nn.Conv2d(D, D, 3,
    # groups=D) and nn.BatchNorm2d(D)); not a checkpoint load.
    conv_w = jax.random.normal(k_w, (D, 1, 3, 3), dtype=jnp.float32) * 0.1
    conv_b = jax.random.normal(k_b, (D,), dtype=jnp.float32) * 0.05
    bn_gamma = 1.0 + 0.1 * jax.random.normal(k_g, (D,), dtype=jnp.float32)
    bn_beta = 0.05 * jax.random.normal(k_bt, (D,), dtype=jnp.float32)
    bn_mean = 0.02 * jax.random.normal(k_m, (D,), dtype=jnp.float32)
    bn_var = 1.0 + 0.1 * jax.nn.softplus(
        jax.random.normal(k_v, (D,), dtype=jnp.float32))

    out = spatial_conv_enhancer(x, Hp, Wp, conv_w, conv_b,
                                bn_gamma, bn_beta, bn_mean, bn_var)
    out = jax.block_until_ready(out)

    ref = _reference(x, Hp, Wp, conv_w, conv_b,
                     bn_gamma, bn_beta, bn_mean, bn_var)
    assert out.shape == (B, N, D)
    assert jnp.allclose(out, ref, atol=1e-4, rtol=1e-4), \
        float(jnp.max(jnp.abs(out - ref)))

    print("KERNEL_OK")
</pallas_src>

<mosaic_0001>
module attributes {stable_mosaic.version = 11 : i64} {
  func.func @_enhancer_kernel(%arg0: i32, %arg1: i32, %arg2: memref<1x8x8x128xf32, #tpu.memory_space<vmem>>, %arg3: memref<9x128xf32, #tpu.memory_space<vmem>>, %arg4: memref<1x128xf32, #tpu.memory_space<vmem>>, %arg5: memref<1x8x8x128xf32, #tpu.memory_space<vmem>>, %arg6: memref<1x10x10x128xf32, #tpu.memory_space<vmem>>) attributes {dimension_semantics = [#tpu.dimension_semantics<parallel>, #tpu.dimension_semantics<parallel>], iteration_bounds = array<i64: 2, 1>, scalar_prefetch = 0 : i64, scratch_operands = 1 : i64, tpu.core_type = #tpu.core_type<tc>, window_params = [{transform_indices = @transform_0, window_bounds = array<i64: 1, 8, 8, 128>}, {transform_indices = @transform_1, window_bounds = array<i64: 9, 128>}, {transform_indices = @transform_2, window_bounds = array<i64: 1, 128>}, {transform_indices = @transform_3, window_bounds = array<i64: 1, 8, 8, 128>}]} {
    %cst = arith.constant 0.000000e+00 : f32
    %0 = vector.broadcast %cst : f32 to vector<1x1x10x128xf32>
    %c0 = arith.constant 0 : index
    %c0_0 = arith.constant 0 : index
    %c0_1 = arith.constant 0 : index
    %c0_2 = arith.constant 0 : index
    %1 = vector.load %arg6[%c0, %c0_0, %c0_1, %c0_2] : memref<1x10x10x128xf32, #tpu.memory_space<vmem>>, vector<1x1x10x128xf32>
    tpu.vector_store %arg6[%c0, %c0_0, %c0_1, %c0_2], %0 {strides = array<i32>} : memref<1x10x10x128xf32, #tpu.memory_space<vmem>>, vector<1x1x10x128xf32>,
    %c0_3 = arith.constant 0 : index
    %c9 = arith.constant 9 : index
    %c0_4 = arith.constant 0 : index
    %c0_5 = arith.constant 0 : index
    %2 = vector.load %arg6[%c0_3, %c9, %c0_4, %c0_5] : memref<1x10x10x128xf32, #tpu.memory_space<vmem>>, vector<1x1x10x128xf32>
    tpu.vector_store %arg6[%c0_3, %c9, %c0_4, %c0_5], %0 {strides = array<i32>} : memref<1x10x10x128xf32, #tpu.memory_space<vmem>>, vector<1x1x10x128xf32>,
    %cst_6 = arith.constant 0.000000e+00 : f32
    %3 = vector.broadcast %cst_6 : f32 to vector<1x10x1x128xf32>
    %c0_7 = arith.constant 0 : index
    %c0_8 = arith.constant 0 : index
    %c0_9 = arith.constant 0 : index
    %c0_10 = arith.constant 0 : index
    %4 = vector.load %arg6[%c0_7, %c0_8, %c0_9, %c0_10] : memref<1x10x10x128xf32, #tpu.memory_space<vmem>>, vector<1x10x1x128xf32>
    tpu.vector_store %arg6[%c0_7, %c0_8, %c0_9, %c0_10], %3 {strides = array<i32>} : memref<1x10x10x128xf32, #tpu.memory_space<vmem>>, vector<1x10x1x128xf32>,
    %c0_11 = arith.constant 0 : index
    %c0_12 = arith.constant 0 : index
    %c9_13 = arith.constant 9 : index
    %c0_14 = arith.constant 0 : index
    %5 = vector.load %arg6[%c0_11, %c0_12, %c9_13, %c0_14] : memref<1x10x10x128xf32, #tpu.memory_space<vmem>>, vector<1x10x1x128xf32>
    tpu.vector_store %arg6[%c0_11, %c0_12, %c9_13, %c0_14], %3 {strides = array<i32>} : memref<1x10x10x128xf32, #tpu.memory_space<vmem>>, vector<1x10x1x128xf32>,
    %c0_15 = arith.constant 0 : index
    %c0_16 = arith.constant 0 : index
    %c0_17 = arith.constant 0 : index
    %c0_18 = arith.constant 0 : index
    %6 = vector.load %arg2[%c0_15, %c0_16, %c0_17, %c0_18] : memref<1x8x8x128xf32, #tpu.memory_space<vmem>>, vector<1x8x8x128xf32>
    %c0_19 = arith.constant 0 : index
    %c1 = arith.constant 1 : index
    %c1_20 = arith.constant 1 : index
    %c0_21 = arith.constant 0 : index
    %7 = vector.load %arg6[%c0_19, %c1, %c1_20, %c0_21] : memref<1x10x10x128xf32, #tpu.memory_space<vmem>>, vector<1x8x8x128xf32>
    tpu.vector_store %arg6[%c0_19, %c1, %c1_20, %c0_21], %6 {strides = array<i32>} : memref<1x10x10x128xf32, #tpu.memory_space<vmem>>, vector<1x8x8x128xf32>,
    %c0_22 = arith.constant 0 : index
    %c0_23 = arith.constant 0 : index
    %8 = vector.load %arg3[%c0_22, %c0_23] : memref<9x128xf32, #tpu.memory_space<vmem>>, vector<9x128xf32>
    %c0_24 = arith.constant 0 : index
    %c0_25 = arith.constant 0 : index
    %9 = vector.load %arg4[%c0_24, %c0_25] : memref<1x128xf32, #tpu.memory_space<vmem>>, vector<1x128xf32>
    %10 = vector.shape_cast %9 : vector<1x128xf32> to vector<128xf32>
    %c0_26 = arith.constant 0 : index
    %c0_27 = arith.constant 0 : index
    %c0_28 = arith.constant 0 : index
    %c0_29 = arith.constant 0 : index
    %11 = vector.load %arg6[%c0_26, %c0_27, %c0_28, %c0_29] : memref<1x10x10x128xf32, #tpu.memory_space<vmem>>, vector<1x8x8x128xf32>
    %12 = vector.extract_strided_slice %8 {offsets = [0, 0], sizes = [1, 128], strides = [1, 1]} : vector<9x128xf32> to vector<1x128xf32>
    %13 = vector.shape_cast %12 : vector<1x128xf32> to vector<128xf32>
    %14 = vector.shape_cast %13 : vector<128xf32> to vector<1x1x1x128xf32>
    %15 = vector.broadcast %14 : vector<1x1x1x128xf32> to vector<1x8x8x128xf32>
    %16 = arith.mulf %11, %15 : vector<1x8x8x128xf32>
    %c0_30 = arith.constant 0 : index
    %c0_31 = arith.constant 0 : index
    %c1_32 = arith.constant 1 : index
    %c0_33 = arith.constant 0 : index
    %17 = vector.load %arg6[%c0_30, %c0_31, %c1_32, %c0_33] : memref<1x10x10x128xf32, #tpu.memory_space<vmem>>, vector<1x8x8x128xf32>
    %18 = vector.extract_strided_slice %8 {offsets = [1, 0], sizes = [1, 128], strides = [1, 1]} : vector<9x128xf32> to vector<1x128xf32>
    %19 = vector.shape_cast %18 : vector<1x128xf32> to vector<128xf32>
    %20 = vector.shape_cast %19 : vector<128xf32> to vector<1x1x1x128xf32>
    %21 = vector.broadcast %20 : vector<1x1x1x128xf32> to vector<1x8x8x128xf32>
    %22 = arith.mulf %17, %21 : vector<1x8x8x128xf32>
    %23 = arith.addf %16, %22 : vector<1x8x8x128xf32>
    %c0_34 = arith.constant 0 : index
    %c0_35 = arith.constant 0 : index
    %c2 = arith.constant 2 : index
    %c0_36 = arith.constant 0 : index
    %24 = vector.load %arg6[%c0_34, %c0_35, %c2, %c0_36] : memref<1x10x10x128xf32, #tpu.memory_space<vmem>>, vector<1x8x8x128xf32>
    %25 = vector.extract_strided_slice %8 {offsets = [2, 0], sizes = [1, 128], strides = [1, 1]} : vector<9x128xf32> to vector<1x128xf32>
    %26 = vector.shape_cast %25 : vector<1x128xf32> to vector<128xf32>
    %27 = vector.shape_cast %26 : vector<128xf32> to vector<1x1x1x128xf32>
    %28 = vector.broadcast %27 : vector<1x1x1x128xf32> to vector<1x8x8x128xf32>
    %29 = arith.mulf %24, %28 : vector<1x8x8x128xf32>
    %30 = arith.addf %23, %29 : vector<1x8x8x128xf32>
    %c0_37 = arith.constant 0 : index
    %c1_38 = arith.constant 1 : index
    %c0_39 = arith.constant 0 : index
    %c0_40 = arith.constant 0 : index
    %31 = vector.load %arg6[%c0_37, %c1_38, %c0_39, %c0_40] : memref<1x10x10x128xf32, #tpu.memory_space<vmem>>, vector<1x8x8x128xf32>
    %32 = vector.extract_strided_slice %8 {offsets = [3, 0], sizes = [1, 128], strides = [1, 1]} : vector<9x128xf32> to vector<1x128xf32>
    %33 = vector.shape_cast %32 : vector<1x128xf32> to vector<128xf32>
    %34 = vector.shape_cast %33 : vector<128xf32> to vector<1x1x1x128xf32>
    %35 = vector.broadcast %34 : vector<1x1x1x128xf32> to vector<1x8x8x128xf32>
    %36 = arith.mulf %31, %35 : vector<1x8x8x128xf32>
    %37 = arith.addf %30, %36 : vector<1x8x8x128xf32>
    %c0_41 = arith.constant 0 : index
    %c1_42 = arith.constant 1 : index
    %c1_43 = arith.constant 1 : index
    %c0_44 = arith.constant 0 : index
    %38 = vector.load %arg6[%c0_41, %c1_42, %c1_43, %c0_44] : memref<1x10x10x128xf32, #tpu.memory_space<vmem>>, vector<1x8x8x128xf32>
    %39 = vector.extract_strided_slice %8 {offsets = [4, 0], sizes = [1, 128], strides = [1, 1]} : vector<9x128xf32> to vector<1x128xf32>
    %40 = vector.shape_cast %39 : vector<1x128xf32> to vector<128xf32>
    %41 = vector.shape_cast %40 : vector<128xf32> to vector<1x1x1x128xf32>
    %42 = vector.broadcast %41 : vector<1x1x1x128xf32> to vector<1x8x8x128xf32>
    %43 = arith.mulf %38, %42 : vector<1x8x8x128xf32>
    %44 = arith.addf %37, %43 : vector<1x8x8x128xf32>
    %c0_45 = arith.constant 0 : index
    %c1_46 = arith.constant 1 : index
    %c2_47 = arith.constant 2 : index
    %c0_48 = arith.constant 0 : index
    %45 = vector.load %arg6[%c0_45, %c1_46, %c2_47, %c0_48] : memref<1x10x10x128xf32, #tpu.memory_space<vmem>>, vector<1x8x8x128xf32>
    %46 = vector.extract_strided_slice %8 {offsets = [5, 0], sizes = [1, 128], strides = [1, 1]} : vector<9x128xf32> to vector<1x128xf32>
    %47 = vector.shape_cast %46 : vector<1x128xf32> to vector<128xf32>
    %48 = vector.shape_cast %47 : vector<128xf32> to vector<1x1x1x128xf32>
    %49 = vector.broadcast %48 : vector<1x1x1x128xf32> to vector<1x8x8x128xf32>
    %50 = arith.mulf %45, %49 : vector<1x8x8x128xf32>
    %51 = arith.addf %44, %50 : vector<1x8x8x128xf32>
    %c0_49 = arith.constant 0 : index
    %c2_50 = arith.constant 2 : index
    %c0_51 = arith.constant 0 : index
    %c0_52 = arith.constant 0 : index
    %52 = vector.load %arg6[%c0_49, %c2_50, %c0_51, %c0_52] : memref<1x10x10x128xf32, #tpu.memory_space<vmem>>, vector<1x8x8x128xf32>
    %53 = vector.extract_strided_slice %8 {offsets = [6, 0], sizes = [1, 128], strides = [1, 1]} : vector<9x128xf32> to vector<1x128xf32>
    %54 = vector.shape_cast %53 : vector<1x128xf32> to vector<128xf32>
    %55 = vector.shape_cast %54 : vector<128xf32> to vector<1x1x1x128xf32>
    %56 = vector.broadcast %55 : vector<1x1x1x128xf32> to vector<1x8x8x128xf32>
    %57 = arith.mulf %52, %56 : vector<1x8x8x128xf32>
    %58 = arith.addf %51, %57 : vector<1x8x8x128xf32>
    %c0_53 = arith.constant 0 : index
    %c2_54 = arith.constant 2 : index
    %c1_55 = arith.constant 1 : index
    %c0_56 = arith.constant 0 : index
    %59 = vector.load %arg6[%c0_53, %c2_54, %c1_55, %c0_56] : memref<1x10x10x128xf32, #tpu.memory_space<vmem>>, vector<1x8x8x128xf32>
    %60 = vector.extract_strided_slice %8 {offsets = [7, 0], sizes = [1, 128], strides = [1, 1]} : vector<9x128xf32> to vector<1x128xf32>
    %61 = vector.shape_cast %60 : vector<1x128xf32> to vector<128xf32>
    %62 = vector.shape_cast %61 : vector<128xf32> to vector<1x1x1x128xf32>
    %63 = vector.broadcast %62 : vector<1x1x1x128xf32> to vector<1x8x8x128xf32>
    %64 = arith.mulf %59, %63 : vector<1x8x8x128xf32>
    %65 = arith.addf %58, %64 : vector<1x8x8x128xf32>
    %c0_57 = arith.constant 0 : index
    %c2_58 = arith.constant 2 : index
    %c2_59 = arith.constant 2 : index
    %c0_60 = arith.constant 0 : index
    %66 = vector.load %arg6[%c0_57, %c2_58, %c2_59, %c0_60] : memref<1x10x10x128xf32, #tpu.memory_space<vmem>>, vector<1x8x8x128xf32>
    %67 = vector.extract_strided_slice %8 {offsets = [8, 0], sizes = [1, 128], strides = [1, 1]} : vector<9x128xf32> to vector<1x128xf32>
    %68 = vector.shape_cast %67 : vector<1x128xf32> to vector<128xf32>
    %69 = vector.shape_cast %68 : vector<128xf32> to vector<1x1x1x128xf32>
    %70 = vector.broadcast %69 : vector<1x1x1x128xf32> to vector<1x8x8x128xf32>
    %71 = arith.mulf %66, %70 : vector<1x8x8x128xf32>
    %72 = arith.addf %65, %71 : vector<1x8x8x128xf32>
    %73 = vector.shape_cast %10 : vector<128xf32> to vector<1x1x1x128xf32>
    %74 = vector.broadcast %73 : vector<1x1x1x128xf32> to vector<1x8x8x128xf32>
    %75 = arith.addf %72, %74 : vector<1x8x8x128xf32>
    %cst_61 = arith.constant 5.000000e-01 : f32
    %76 = vector.broadcast %cst_61 : f32 to vector<1x8x8x128xf32>
    %77 = arith.mulf %76, %75 : vector<1x8x8x128xf32>
    %cst_62 = arith.constant 0.707106769 : f32
    %78 = vector.broadcast %cst_62 : f32 to vector<1x8x8x128xf32>
    %79 = arith.mulf %75, %78 : vector<1x8x8x128xf32>
    %80 = math.erf %79 : vector<1x8x8x128xf32>
    %cst_63 = arith.constant 1.000000e+00 : f32
    %81 = vector.broadcast %cst_63 : f32 to vector<1x8x8x128xf32>
    %82 = arith.addf %81, %80 : vector<1x8x8x128xf32>
    %83 = arith.mulf %77, %82 : vector<1x8x8x128xf32>
    %c0_64 = arith.constant 0 : index
    %c0_65 = arith.constant 0 : index
    %c0_66 = arith.constant 0 : index
    %c0_67 = arith.constant 0 : index
    %84 = vector.load %arg5[%c0_64, %c0_65, %c0_66, %c0_67] : memref<1x8x8x128xf32, #tpu.memory_space<vmem>>, vector<1x8x8x128xf32>
    tpu.vector_store %arg5[%c0_64, %c0_65, %c0_66, %c0_67], %83 {strides = array<i32>} : memref<1x8x8x128xf32, #tpu.memory_space<vmem>>, vector<1x8x8x128xf32>,
    return
  }
  func.func @transform_0(%arg0: i32, %arg1: i32) -> (i32, i32, i32, i32) {
    %c0_i32 = arith.constant 0 : i32
    %c0_i32_0 = arith.constant 0 : i32
    %c0_i32_1 = arith.constant 0 : i32
    return %arg0, %c0_i32, %c0_i32_0, %arg1 : i32, i32, i32, i32
  }
  func.func @transform_1(%arg0: i32, %arg1: i32) -> (i32, i32) {
    %c0_i32 = arith.constant 0 : i32
    %c0_i32_0 = arith.constant 0 : i32
    return %c0_i32, %arg1 : i32, i32
  }
  func.func @transform_2(%arg0: i32, %arg1: i32) -> (i32, i32) {
    %c0_i32 = arith.constant 0 : i32
    %c0_i32_0 = arith.constant 0 : i32
    return %c0_i32, %arg1 : i32, i32
  }
  func.func @transform_3(%arg0: i32, %arg1: i32) -> (i32, i32, i32, i32) {
    %c0_i32 = arith.constant 0 : i32
    %c0_i32_0 = arith.constant 0 : i32
    %c0_i32_1 = arith.constant 0 : i32
    return %arg0, %c0_i32, %c0_i32_0, %arg1 : i32, i32, i32, i32
  }
}

</mosaic_0001>

<llo_original>
// kernel: tpu_custom_call.1
$region0: #{tpu_custom_call.1}
  #allocation0 [shape = 'u32[]', space=smem, size = 0x4, offset = 0x4, fixed_abs, tag = 'smem constant byte address 0x4 - core index']
  #allocation1 [shape = 'u32[144,128]{1,0:T(1,128)}', space=vmem, size = 0x12000, scoped, tag = 'internal scratch']
  #allocation2 [shape = 'f32[1,10,10,128]{3,2,1,0:T(8,128)}', space=vmem, size = 0x14000, scoped, tag = 'scratch operand']
  %s0 = inlined_call_operand.hbm [shape: f32[2,8,8,128], index: 0, kind: input, shape index: {}]
  %s1 = inlined_call_operand.hbm [shape: f32[9,128], index: 1, kind: input, shape index: {}]
  %s2 = inlined_call_operand.vmem [shape: f32[1,128], index: 2, kind: input, shape index: {}]
  %s3 = inlined_call_operand.hbm [shape: f32[2,8,8,128], index: 3, kind: output, shape index: {}]
  %s4 = sld [smem:[#allocation0]]
  $region53: #{tpu_custom_call.1} parent=0
    _
  %s6 = ssub.s32 1, %s4
  %s7 = scalar_select 0, %s6, %s4
  $region1: #{tpu_custom_call.1} parent=0
    #allocation3 [shape = 'u8[65536]{0}', space=vmem, size = 0x10000, scoped, tag = 'input window, operand 0']
    #allocation4 [shape = 's32[2]{0}', space=sflag, size = 0x8, scoped, tag = 'scoped memory for tpu_custom_call.1']
    #allocation5 [shape = 's32[2]{0}', space=sflag, size = 0x8, scoped, tag = 'scoped memory for tpu_custom_call.1']
    #allocation6 [shape = 'u8[8192]{0}', space=vmem, size = 0x2000, scoped, tag = 'input window, operand 1, single buffered']
    #allocation7 [shape = 's32[1]{0}', space=sflag, size = 0x4, scoped, tag = 'scoped memory for tpu_custom_call.1']
    #allocation8 [shape = 'u8[65536]{0}', space=vmem, size = 0x10000, scoped, tag = 'output window, operand 0']
    %8 = vsyncpa [#allocation4], 0
    %s9 = scalar_lea.sflag [#allocation4], 1
    %10 = vsyncpa %s9, 0
    %11 = vsyncpa [#allocation7], 0
    %12 = vsyncpa [#allocation5], 0
    %s13 = scalar_lea.sflag [#allocation5], 1
    %14 = vsyncpa %s13, 0
    loop: start=0, step=1, limit=4
    $region2: #{tpu_custom_call.1} parent=1 // loop_pre_header
      _
    $region3: #{tpu_custom_call.1} parent=1 // loop_header
      %s16 = sphi 0, %s20
      %p17 = scmp.ge.s32.totalorder %s16, 4
      %s23 = sphi 0, %s35
      %s24 = sphi 0, %s31
      %s25 = sphi 0, %s23
      %s26 = sphi 0, %s24
      %s27 = sphi 0, %s25
      %s28 = sphi 0, %s26
      %s40 = sphi 0, %s42
      %s43 = sphi 0, %s40
      %s44 = sphi 0, %s43
      %s60 = sphi 0, %s44
      %s66 = sphi 0, %s68
      %s69 = sphi 0, %s66
      %s70 = sphi 0, %s69
      %s86 = sphi 0, %s70
      %s92 = sphi 0, %s94
      %s95 = sphi 0, %s92
      %s96 = sphi 0, %s95
      %s112 = sphi 0, %s96
      %s120 = sphi 0, %s122
      %s123 = sphi 0, %s120
      %s124 = sphi 0, %s123
      %s140 = sphi 0, %s124
    $region4: #{tpu_custom_call.1} parent=1 // loop_header_branch
      %19 = sbr.rel (%p17) target = $region8
    $region5: #{tpu_custom_call.1} parent=1 // loop_body
      %s21 = ssub.s32 %s16, 1
      %s22 = ssub.s32 %s16, 2
      %s29 = sadd.s32 1, %s24
      %p30 = scmp.ge.s32.totalorder %s29, 1
      %s31 = scalar_select %p30, 0, %s29
      %s32 = sadd.s32 1, %s23
      %s33 = scalar_select %p30, %s32, %s23
      %p34 = scmp.ge.s32.totalorder %s33, 2
      %s35 = scalar_select %p34, 0, %s33
      %s36 = ssub.s32 %s23, %s35
      %s37 = ssub.s32 %s24, %s31
      %s38 = sor.u32 %s36, %s37
      %p39 = scmp.eq.s32.totalorder %s38, 0
      %s41 = sadd.s32 %s40, 1
      %s42 = scalar_select %p39, %s40, %s41
      %p45 = pneg %p39
      %p46 = scmp.eq.s32.totalorder %s16, 1
      %p47 = por %p45, %p46
      %p48 = scmp.ne.s32.totalorder %s40, %s43
      %p49 = scmp.eq.s32.totalorder %s16, 0
      %p50 = por %p48, %p49
      %p51 = scmp.ne.s32.totalorder %s40, %s43
      %p52 = scmp.eq.s32.totalorder %s21, 1
      %p53 = por %p51, %p52
      %p54 = scmp.ne.s32.totalorder %s43, %s44
      %p55 = scmp.eq.s32.totalorder %s21, 0
      %p56 = por %p54, %p55
      %p57 = scmp.ne.s32.totalorder %s43, %s44
      %p58 = scmp.eq.s32.totalorder %s22, 1
      %p59 = por %p57, %p58
      %p61 = scmp.ne.s32.totalorder %s44, %s60
      %p62 = scmp.eq.s32.totalorder %s22, 0
      %p63 = por %p61, %p62
      %s64 = ssub.s32 %s24, %s31
      %p65 = scmp.eq.s32.totalorder %s64, 0
      %s67 = sadd.s32 %s66, 1
      %s68 = scalar_select %p65, %s66, %s67
      %p71 = pneg %p65
      %p72 = scmp.eq.s32.totalorder %s16, 1
      %p73 = por %p71, %p72
      %p74 = scmp.ne.s32.totalorder %s66, %s69
      %p75 = scmp.eq.s32.totalorder %s16, 0
      %p76 = por %p74, %p75
      %p77 = scmp.ne.s32.totalorder %s66, %s69
      %p78 = scmp.eq.s32.totalorder %s21, 1
      %p79 = por %p77, %p78
      %p80 = scmp.ne.s32.totalorder %s69, %s70
      %p81 = scmp.eq.s32.totalorder %s21, 0
      %p82 = por %p80, %p81
      %p83 = scmp.ne.s32.totalorder %s69, %s70
      %p84 = scmp.eq.s32.totalorder %s22, 1
      %p85 = por %p83, %p84
      %p87 = scmp.ne.s32.totalorder %s70, %s86
      %p88 = scmp.eq.s32.totalorder %s22, 0
      %p89 = por %p87, %p88
      %s90 = ssub.s32 %s24, %s31
      %p91 = scmp.eq.s32.totalorder %s90, 0
      %s93 = sadd.s32 %s92, 1
      %s94 = scalar_select %p91, %s92, %s93
      %p97 = pneg %p91
      %p98 = scmp.eq.s32.totalorder %s16, 1
      %p99 = por %p97, %p98
      %p100 = scmp.ne.s32.totalorder %s92, %s95
      %p101 = scmp.eq.s32.totalorder %s16, 0
      %p102 = por %p100, %p101
      %p103 = scmp.ne.s32.totalorder %s92, %s95
      %p104 = scmp.eq.s32.totalorder %s21, 1
      %p105 = por %p103, %p104
      %p106 = scmp.ne.s32.totalorder %s95, %s96
      %p107 = scmp.eq.s32.totalorder %s21, 0
      %p108 = por %p106, %p107
      %p109 = scmp.ne.s32.totalorder %s95, %s96
      %p110 = scmp.eq.s32.totalorder %s22, 1
      %p111 = por %p109, %p110
      %p113 = scmp.ne.s32.totalorder %s96, %s112
      %p114 = scmp.eq.s32.totalorder %s22, 0
      %p115 = por %p113, %p114
      %s116 = ssub.s32 %s23, %s35
      %s117 = ssub.s32 %s24, %s31
      %s118 = sor.u32 %s116, %s117
      %p119 = scmp.eq.s32.totalorder %s118, 0
      %s121 = sadd.s32 %s120, 1
      %s122 = scalar_select %p119, %s120, %s121
      %p125 = pneg %p119
      %p126 = scmp.eq.s32.totalorder %s16, 1
      %p127 = por %p125, %p126
      %p128 = scmp.ne.s32.totalorder %s120, %s123
      %p129 = scmp.eq.s32.totalorder %s16, 0
      %p130 = por %p128, %p129
      %p131 = scmp.ne.s32.totalorder %s120, %s123
      %p132 = scmp.eq.s32.totalorder %s21, 1
      %p133 = por %p131, %p132
      %p134 = scmp.ne.s32.totalorder %s123, %s124
      %p135 = scmp.eq.s32.totalorder %s21, 0
      %p136 = por %p134, %p135
      %p137 = scmp.ne.s32.totalorder %s123, %s124
      %p138 = scmp.eq.s32.totalorder %s22, 1
      %p139 = por %p137, %p138
      %p141 = scmp.ne.s32.totalorder %s124, %s140
      %p142 = scmp.eq.s32.totalorder %s22, 0
      %p143 = por %p141, %p142
      %p144 = scmp.le.s32.totalorder 1, %s16
      %p145 = scmp.lt.s32.totalorder %s16, 3
      %p146 = pnand %p144, %p145
      %p147 = pneg %p146
      // Predicated region
      $region9: #{tpu_custom_call.1} parent=5 // pred_check
        _
      $region10: #{tpu_custom_call.1} parent=5 // pred_check_branch
        %149 = sbr.rel (%p146) target = $region12
      $region11: #{tpu_custom_call.1} parent=5 // pred_region
        %s150 = ssub.s32 %s16, 1
        // Predicated region
        $region13: #{tpu_custom_call.1} parent=11 // pred_check
          %p151 = pneg %p82
        $region14: #{tpu_custom_call.1} parent=11 // pred_check_branch
          %153 = sbr.rel (%p151) target = $region16
        $region15: #{tpu_custom_call.1} parent=11 // pred_region
          %s155 = ssub.s32 256, 256
          %156 = vsyncadd [#allocation7], %s155
          %s157 = smul.addr %s26, 128
          %s158 = scalar_lea.hbm %s1, %s157
          %s159 = sshll.u32 [#allocation6], 4
          %s160 = int_to_ptr.vmem [resolvable:$true] %s159
          %165 = dma.hbm_to_vmem [thread:$0]  %s158, 256, %s160, [#allocation7], 128, 128, 8
        $region16: #{tpu_custom_call.1} parent=11 // pred_fallthru
          _
        // Predicated region
        $region17: #{tpu_custom_call.1} parent=11 // pred_check
          %p166 = pneg %p108
        $region18: #{tpu_custom_call.1} parent=11 // pred_check_branch
          %168 = sbr.rel (%p166) target = $region20
        $region19: #{tpu_custom_call.1} parent=11 // pred_region
          %p169 = scmp.lt.s32.totalorder %s26, 0
          %s170 = scalar_select %p169, %s26, 0
          %s171 = scalar_lea.vmem %s2, %s170
        $region20: #{tpu_custom_call.1} parent=11 // pred_fallthru
          _
      $region12: #{tpu_custom_call.1} parent=5 // pred_fallthru
        _
      %p172 = scmp.lt.s32.totalorder %s16, 2
      // Predicated region
      $region21: #{tpu_custom_call.1} parent=5 // pred_check
        %p173 = pneg %p172
      $region22: #{tpu_custom_call.1} parent=5 // pred_check_branch
        %175 = sbr.rel (%p173) target = $region24
      $region23: #{tpu_custom_call.1} parent=5 // pred_region
        // Predicated region
        $region25: #{tpu_custom_call.1} parent=23 // pred_check
          %p176 = pneg %p50
        $region26: #{tpu_custom_call.1} parent=23 // pred_check_branch
          %178 = sbr.rel (%p176) target = $region28
        $region27: #{tpu_custom_call.1} parent=23 // pred_region
          %s179 = sand.u32 %s40, 1
          %s180 = scalar_lea.sflag [#allocation4], %s179
          %s181 = sand.u32 %s40, 1
          %s182 = smul.addr %s181, 64
          %s183 = scalar_lea.vmem [#allocation3], %s182
          %s185 = ssub.s32 1024, 1024
          %186 = vsyncadd %s180, %s185
          %s187 = smul.addr %s23, 8
          %s188 = sadd.s32 %s24, %s187
          %s189 = smul.addr %s188, 128
          %s190 = scalar_lea.hbm %s0, %s189
          %s191 = sshll.u32 %s183, 4
          %s192 = int_to_ptr.vmem [resolvable:$true] %s191
          %197 = dma.hbm_to_vmem [thread:$0]  %s190, 1024, %s192, %s180, 128, 128, 8
        $region28: #{tpu_custom_call.1} parent=23 // pred_fallthru
          _
      $region24: #{tpu_custom_call.1} parent=5 // pred_fallthru
        _
      %p198 = scmp.le.s32.totalorder 1, %s16
      %p199 = scmp.lt.s32.totalorder %s16, 3
      %p200 = pnand %p198, %p199
      %p201 = pneg %p200
      // Predicated region
      $region29: #{tpu_custom_call.1} parent=5 // pred_check
        _
      $region30: #{tpu_custom_call.1} parent=5 // pred_check_branch
        %203 = sbr.rel (%p200) target = $region32
      $region31: #{tpu_custom_call.1} parent=5 // pred_region
        %s204 = ssub.s32 %s16, 1
        %s205 = sand.u32 %s43, 1
        %s206 = scalar_lea.sflag [#allocation4], %s205
        %s207 = sand.u32 %s43, 1
        %s208 = smul.addr %s207, 64
        %s209 = scalar_lea.vmem [#allocation3], %s208
        // Predicated region
        $region33: #{tpu_custom_call.1} parent=31 // pred_check
          %p210 = pneg %p56
        $region34: #{tpu_custom_call.1} parent=31 // pred_check_branch
          %212 = sbr.rel (%p210) target = $region36
        $region35: #{tpu_custom_call.1} parent=31 // pred_region
          %213 = dma.done %s206, 1024
        $region36: #{tpu_custom_call.1} parent=31 // pred_fallthru
          _
        // Predicated region
        $region37: #{tpu_custom_call.1} parent=31 // pred_check
          %p214 = pneg %p82
        $region38: #{tpu_custom_call.1} parent=31 // pred_check_branch
          %216 = sbr.rel (%p214) target = $region40
        $region39: #{tpu_custom_call.1} parent=31 // pred_region
          %217 = dma.done [#allocation7], 256
        $region40: #{tpu_custom_call.1} parent=31 // pred_fallthru
          _
        %s218 = sand.u32 %s43, 1
        %s219 = scalar_lea.sflag [#allocation4], %s218
        %s220 = sand.u32 %s43, 1
        %s221 = smul.addr %s220, 64
        %s222 = scalar_lea.vmem [#allocation3], %s221
        %p223 = pneg %p56
        %p224 = pneg %p53
        %p225 = pneg %p82
        %p226 = pneg %p79
        %p227 = scmp.lt.s32.totalorder %s26, 0
        %s228 = scalar_select %p227, %s26, 0
        %s229 = scalar_lea.vmem %s2, %s228
        %p230 = pneg %p108
        %p231 = pneg %p105
        %p232 = pneg %p136
        %p233 = pneg %p133
        %s234 = sand.u32 %s123, 1
        %s235 = scalar_lea.sflag [#allocation5], %s234
        %s236 = sand.u32 %s123, 1
        %s237 = smul.addr %s236, 64
        %s238 = scalar_lea.vmem [#allocation8], %s237
        %p239 = scmp.lt.s32.totalorder %s26, 0
        %s240 = scalar_select %p239, %s26, 0
        %s241 = scalar_lea.vmem %s2, %s240
        %242 = vst [vmem:[#allocation2] sm:$0xff] 0.0
        %243 = vst [vmem:[#allocation2 + $0x8] sm:$0x3] 0.0
        %s244 = scalar_lea.vmem [#allocation2], 144
        %245 = vst [vmem:[%s244] sm:$0xff] 0.0
        %246 = vst [vmem:[%s244 + $0x8] sm:$0x3] 0.0
        %247 = vst [vmem:[#allocation2] sm:$0x1] 0.0
        %248 = vst [vmem:[#allocation2 + $0x10] sm:$0x1] 0.0
        %249 = vst [vmem:[#allocation2 + $0x20] sm:$0x1] 0.0
        %250 = vst [vmem:[#allocation2 + $0x30] sm:$0x1] 0.0
        %251 = vst [vmem:[#allocation2 + $0x40] sm:$0x1] 0.0
        %252 = vst [vmem:[#allocation2 + $0x50] sm:$0x1] 0.0
        %253 = vst [vmem:[#allocation2 + $0x60] sm:$0x1] 0.0
        %254 = vst [vmem:[#allocation2 + $0x70] sm:$0x1] 0.0
        %255 = vst [vmem:[#allocation2 + $0x80] sm:$0x1] 0.0
        %256 = vst [vmem:[#allocation2 + $0x90] sm:$0x1] 0.0
        %257 = vst [vmem:[#allocation2 + $0x9] sm:$0x1] 0.0
        %258 = vst [vmem:[#allocation2 + $0x19] sm:$0x1] 0.0
        %259 = vst [vmem:[#allocation2 + $0x29] sm:$0x1] 0.0
        %260 = vst [vmem:[#allocation2 + $0x39] sm:$0x1] 0.0
        %261 = vst [vmem:[#allocation2 + $0x49] sm:$0x1] 0.0
        %262 = vst [vmem:[#allocation2 + $0x59] sm:$0x1] 0.0
        %263 = vst [vmem:[#allocation2 + $0x69] sm:$0x1] 0.0
        %264 = vst [vmem:[#allocation2 + $0x79] sm:$0x1] 0.0
        %265 = vst [vmem:[#allocation2 + $0x89] sm:$0x1] 0.0
        %266 = vst [vmem:[#allocation2 + $0x99] sm:$0x1] 0.0
        %v267 = vld [vmem:[%s209] sm:$0xff]
        %v268 = vld [vmem:[%s209 + $0x8] sm:$0xff]
        %v269 = vld [vmem:[%s209 + $0x10] sm:$0xff]
        %v270 = vld [vmem:[%s209 + $0x18] sm:$0xff]
        %v271 = vld [vmem:[%s209 + $0x20] sm:$0xff]
        %v272 = vld [vmem:[%s209 + $0x28] sm:$0xff]
        %v273 = vld [vmem:[%s209 + $0x30] sm:$0xff]
        %v274 = vld [vmem:[%s209 + $0x38] sm:$0xff]
        %s275 = scalar_lea.vmem [#allocation2], 16
        %276 = vst [vmem:[%s275 + $0x1] sm:$0xff] %v267
        %277 = vst [vmem:[%s275 + $0x11] sm:$0xff] %v268
        %278 = vst [vmem:[%s275 + $0x21] sm:$0xff] %v269
        %279 = vst [vmem:[%s275 + $0x31] sm:$0xff] %v270
        %280 = vst [vmem:[%s275 + $0x41] sm:$0xff] %v271
        %281 = vst [vmem:[%s275 + $0x51] sm:$0xff] %v272
        %282 = vst [vmem:[%s275 + $0x61] sm:$0xff] %v273
        %283 = vst [vmem:[%s275 + $0x71] sm:$0xff] %v274
        %v284 = vld [vmem:[#allocation6] sm:$0xff]
        %v285 = vld [vmem:[#allocation6 + $0x8] sm:$0x1]
        %v286 = vld [vmem:[%s241] sm:$0x1]
        %v287 = vld [vmem:[#allocation2] sm:$0xff]
        %v288 = vld [vmem:[#allocation2 + $0x10] sm:$0xff]
        %v289 = vld [vmem:[#allocation2 + $0x20] sm:$0xff]
        %v290 = vld [vmem:[#allocation2 + $0x30] sm:$0xff]
        %v291 = vld [vmem:[#allocation2 + $0x40] sm:$0xff]
        %v292 = vld [vmem:[#allocation2 + $0x50] sm:$0xff]
        %v293 = vld [vmem:[#allocation2 + $0x60] sm:$0xff]
        %v294 = vld [vmem:[#allocation2 + $0x70] sm:$0xff]
        %v295 = vlaneseq
        %v296 = vshrl.u32 %v295, 7
        %v297 = vsub.s32 0, %v296
        %v298 = vrot.slane %v284, %v297
        %v299 = vmul.f32 %v287, %v298
        %v300 = vmul.f32 %v288, %v298
        %v301 = vmul.f32 %v289, %v298
        %v302 = vmul.f32 %v290, %v298
        %v303 = vmul.f32 %v291, %v298
        %v304 = vmul.f32 %v292, %v298
        %v305 = vmul.f32 %v293, %v298
        %v306 = vmul.f32 %v294, %v298
        %v307 = vld [vmem:[#allocation2 + $0x1] sm:$0xff]
        %v308 = vld [vmem:[#allocation2 + $0x11] sm:$0xff]
        %v309 = vld [vmem:[#allocation2 + $0x21] sm:$0xff]
        %v310 = vld [vmem:[#allocation2 + $0x31] sm:$0xff]
        %v311 = vld [vmem:[#allocation2 + $0x41] sm:$0xff]
        %v312 = vld [vmem:[#allocation2 + $0x51] sm:$0xff]
        %v313 = vld [vmem:[#allocation2 + $0x61] sm:$0xff]
        %v314 = vld [vmem:[#allocation2 + $0x71] sm:$0xff]
        %v315 = vlaneseq
        %v316 = vshrl.u32 %v315, 7
        %v317 = vsub.s32 1, %v316
        %v318 = vrot.slane %v284, %v317
        %v319 = vmul.f32 %v307, %v318
        %v320 = vmul.f32 %v308, %v318
        %v321 = vmul.f32 %v309, %v318
        %v322 = vmul.f32 %v310, %v318
        %v323 = vmul.f32 %v311, %v318
        %v324 = vmul.f32 %v312, %v318
        %v325 = vmul.f32 %v313, %v318
        %v326 = vmul.f32 %v314, %v318
        %v327 = vadd.f32 %v299, %v319
        %v328 = vadd.f32 %v300, %v320
        %v329 = vadd.f32 %v301, %v321
        %v330 = vadd.f32 %v302, %v322
        %v331 = vadd.f32 %v303, %v323
        %v332 = vadd.f32 %v304, %v324
        %v333 = vadd.f32 %v305, %v325
        %v334 = vadd.f32 %v306, %v326
        %v335 = vld [vmem:[#allocation2 + $0x2] sm:$0xff]
        %v336 = vld [vmem:[#allocation2 + $0x12] sm:$0xff]
        %v337 = vld [vmem:[#allocation2 + $0x22] sm:$0xff]
        %v338 = vld [vmem:[#allocation2 + $0x32] sm:$0xff]
        %v339 = vld [vmem:[#allocation2 + $0x42] sm:$0xff]
        %v340 = vld [vmem:[#allocation2 + $0x52] sm:$0xff]
        %v341 = vld [vmem:[#allocation2 + $0x62] sm:$0xff]
        %v342 = vld [vmem:[#allocation2 + $0x72] sm:$0xff]
        %v343 = vlaneseq
        %v344 = vshrl.u32 %v343, 7
        %v345 = vsub.s32 2, %v344
        %v346 = vrot.slane %v284, %v345
        %v347 = vmul.f32 %v335, %v346
        %v348 = vmul.f32 %v336, %v346
        %v349 = vmul.f32 %v337, %v346
        %v350 = vmul.f32 %v338, %v346
        %v351 = vmul.f32 %v339, %v346
        %v352 = vmul.f32 %v340, %v346
        %v353 = vmul.f32 %v341, %v346
        %v354 = vmul.f32 %v342, %v346
        %v355 = vadd.f32 %v327, %v347
        %v356 = vadd.f32 %v328, %v348
        %v357 = vadd.f32 %v329, %v349
        %v358 = vadd.f32 %v330, %v350
        %v359 = vadd.f32 %v331, %v351
        %v360 = vadd.f32 %v332, %v352
        %v361 = vadd.f32 %v333, %v353
        %v362 = vadd.f32 %v334, %v354
        %v363 = vld [vmem:[%s275] sm:$0xff]
        %v364 = vld [vmem:[%s275 + $0x10] sm:$0xff]
        %v365 = vld [vmem:[%s275 + $0x20] sm:$0xff]
        %v366 = vld [vmem:[%s275 + $0x30] sm:$0xff]
        %v367 = vld [vmem:[%s275 + $0x40] sm:$0xff]
        %v368 = vld [vmem:[%s275 + $0x50] sm:$0xff]
        %v369 = vld [vmem:[%s275 + $0x60] sm:$0xff]
        %v370 = vld [vmem:[%s275 + $0x70] sm:$0xff]
        %v371 = vlaneseq
        %v372 = vshrl.u32 %v371, 7
        %v373 = vsub.s32 3, %v372
        %v374 = vrot.slane %v284, %v373
        %v375 = vmul.f32 %v363, %v374
        %v376 = vmul.f32 %v364, %v374
        %v377 = vmul.f32 %v365, %v374
        %v378 = vmul.f32 %v366, %v374
        %v379 = vmul.f32 %v367, %v374
        %v380 = vmul.f32 %v368, %v374
        %v381 = vmul.f32 %v369, %v374
        %v382 = vmul.f32 %v370, %v374
        %v383 = vadd.f32 %v355, %v375
        %v384 = vadd.f32 %v356, %v376
        %v385 = vadd.f32 %v357, %v377
        %v386 = vadd.f32 %v358, %v378
        %v387 = vadd.f32 %v359, %v379
        %v388 = vadd.f32 %v360, %v380
        %v389 = vadd.f32 %v361, %v381
        %v390 = vadd.f32 %v362, %v382
        %v391 = vld [vmem:[%s275 + $0x1] sm:$0xff]
        %v392 = vld [vmem:[%s275 + $0x11] sm:$0xff]
        %v393 = vld [vmem:[%s275 + $0x21] sm:$0xff]
        %v394 = vld [vmem:[%s275 + $0x31] sm:$0xff]
        %v395 = vld [vmem:[%s275 + $0x41] sm:$0xff]
        %v396 = vld [vmem:[%s275 + $0x51] sm:$0xff]
        %v397 = vld [vmem:[%s275 + $0x61] sm:$0xff]
        %v398 = vld [vmem:[%s275 + $0x71] sm:$0xff]
        %v399 = vlaneseq
        %v400 = vshrl.u32 %v399, 7
        %v401 = vsub.s32 4, %v400
        %v402 = vrot.slane %v284, %v401
        %v403 = vmul.f32 %v391, %v402
        %v404 = vmul.f32 %v392, %v402
        %v405 = vmul.f32 %v393, %v402
        %v406 = vmul.f32 %v394, %v402
        %v407 = vmul.f32 %v395, %v402
        %v408 = vmul.f32 %v396, %v402
        %v409 = vmul.f32 %v397, %v402
        %v410 = vmul.f32 %v398, %v402
        %v411 = vadd.f32 %v383, %v403
        %v412 = vadd.f32 %v384, %v404
        %v413 = vadd.f32 %v385, %v405
        %v414 = vadd.f32 %v386, %v406
        %v415 = vadd.f32 %v387, %v407
        %v416 = vadd.f32 %v388, %v408
        %v417 = vadd.f32 %v389, %v409
        %v418 = vadd.f32 %v390, %v410
        %v419 = vld [vmem:[%s275 + $0x2] sm:$0xff]
        %v420 = vld [vmem:[%s275 + $0x12] sm:$0xff]
        %v421 = vld [vmem:[%s275 + $0x22] sm:$0xff]
        %v422 = vld [vmem:[%s275 + $0x32] sm:$0xff]
        %v423 = vld [vmem:[%s275 + $0x42] sm:$0xff]
        %v424 = vld [vmem:[%s275 + $0x52] sm:$0xff]
        %v425 = vld [vmem:[%s275 + $0x62] sm:$0xff]
        %v426 = vld [vmem:[%s275 + $0x72] sm:$0xff]
        %v427 = vlaneseq
        %v428 = vshrl.u32 %v427, 7
        %v429 = vsub.s32 5, %v428
        %v430 = vrot.slane %v284, %v429
        %v431 = vmul.f32 %v419, %v430
        %v432 = vmul.f32 %v420, %v430
        %v433 = vmul.f32 %v421, %v430
        %v434 = vmul.f32 %v422, %v430
        %v435 = vmul.f32 %v423, %v430
        %v436 = vmul.f32 %v424, %v430
        %v437 = vmul.f32 %v425, %v430
        %v438 = vmul.f32 %v426, %v430
        %v439 = vadd.f32 %v411, %v431
        %v440 = vadd.f32 %v412, %v432
        %v441 = vadd.f32 %v413, %v433
        %v442 = vadd.f32 %v414, %v434
        %v443 = vadd.f32 %v415, %v435
        %v444 = vadd.f32 %v416, %v436
        %v445 = vadd.f32 %v417, %v437
        %v446 = vadd.f32 %v418, %v438
        %s447 = scalar_lea.vmem [#allocation2], 32
        %v448 = vld [vmem:[%s447] sm:$0xff]
        %v449 = vld [vmem:[%s447 + $0x10] sm:$0xff]
        %v450 = vld [vmem:[%s447 + $0x20] sm:$0xff]
        %v451 = vld [vmem:[%s447 + $0x30] sm:$0xff]
        %v452 = vld [vmem:[%s447 + $0x40] sm:$0xff]
        %v453 = vld [vmem:[%s447 + $0x50] sm:$0xff]
        %v454 = vld [vmem:[%s447 + $0x60] sm:$0xff]
        %v455 = vld [vmem:[%s447 + $0x70] sm:$0xff]
        %v456 = vlaneseq
        %v457 = vshrl.u32 %v456, 7
        %v458 = vsub.s32 6, %v457
        %v459 = vrot.slane %v284, %v458
        %v460 = vmul.f32 %v448, %v459
        %v461 = vmul.f32 %v449, %v459
        %v462 = vmul.f32 %v450, %v459
        %v463 = vmul.f32 %v451, %v459
        %v464 = vmul.f32 %v452, %v459
        %v465 = vmul.f32 %v453, %v459
        %v466 = vmul.f32 %v454, %v459
        %v467 = vmul.f32 %v455, %v459
        %v468 = vadd.f32 %v439, %v460
        %v469 = vadd.f32 %v440, %v461
        %v470 = vadd.f32 %v441, %v462
        %v471 = vadd.f32 %v442, %v463
        %v472 = vadd.f32 %v443, %v464
        %v473 = vadd.f32 %v444, %v465
        %v474 = vadd.f32 %v445, %v466
        %v475 = vadd.f32 %v446, %v467
        %v476 = vld [vmem:[%s447 + $0x1] sm:$0xff]
        %v477 = vld [vmem:[%s447 + $0x11] sm:$0xff]
        %v478 = vld [vmem:[%s447 + $0x21] sm:$0xff]
        %v479 = vld [vmem:[%s447 + $0x31] sm:$0xff]
        %v480 = vld [vmem:[%s447 + $0x41] sm:$0xff]
        %v481 = vld [vmem:[%s447 + $0x51] sm:$0xff]
        %v482 = vld [vmem:[%s447 + $0x61] sm:$0xff]
        %v483 = vld [vmem:[%s447 + $0x71] sm:$0xff]
        %v484 = vlaneseq
        %v485 = vshrl.u32 %v484, 7
        %v486 = vsub.s32 7, %v485
        %v487 = vrot.slane %v284, %v486
        %v488 = vmul.f32 %v476, %v487
        %v489 = vmul.f32 %v477, %v487
        %v490 = vmul.f32 %v478, %v487
        %v491 = vmul.f32 %v479, %v487
        %v492 = vmul.f32 %v480, %v487
        %v493 = vmul.f32 %v481, %v487
        %v494 = vmul.f32 %v482, %v487
        %v495 = vmul.f32 %v483, %v487
        %v496 = vadd.f32 %v468, %v488
        %v497 = vadd.f32 %v469, %v489
        %v498 = vadd.f32 %v470, %v490
        %v499 = vadd.f32 %v471, %v491
        %v500 = vadd.f32 %v472, %v492
        %v501 = vadd.f32 %v473, %v493
        %v502 = vadd.f32 %v474, %v494
        %v503 = vadd.f32 %v475, %v495
        %v504 = vld [vmem:[%s447 + $0x2] sm:$0xff]
        %v505 = vld [vmem:[%s447 + $0x12] sm:$0xff]
        %v506 = vld [vmem:[%s447 + $0x22] sm:$0xff]
        %v507 = vld [vmem:[%s447 + $0x32] sm:$0xff]
        %v508 = vld [vmem:[%s447 + $0x42] sm:$0xff]
        %v509 = vld [vmem:[%s447 + $0x52] sm:$0xff]
        %v510 = vld [vmem:[%s447 + $0x62] sm:$0xff]
        %v511 = vld [vmem:[%s447 + $0x72] sm:$0xff]
        %v512 = vlaneseq
        %v513 = vshrl.u32 %v512, 7
        %v514 = vsub.s32 0, %v513
        %v515 = vrot.slane %v285, %v514
        %v516 = vmul.f32 %v504, %v515
        %v517 = vmul.f32 %v505, %v515
        %v518 = vmul.f32 %v506, %v515
        %v519 = vmul.f32 %v507, %v515
        %v520 = vmul.f32 %v508, %v515
        %v521 = vmul.f32 %v509, %v515
        %v522 = vmul.f32 %v510, %v515
        %v523 = vmul.f32 %v511, %v515
        %v524 = vadd.f32 %v496, %v516
        %v525 = vadd.f32 %v497, %v517
        %v526 = vadd.f32 %v498, %v518
        %v527 = vadd.f32 %v499, %v519
        %v528 = vadd.f32 %v500, %v520
        %v529 = vadd.f32 %v501, %v521
        %v530 = vadd.f32 %v502, %v522
        %v531 = vadd.f32 %v503, %v523
        %v533 = vlaneseq
        %v534 = vshrl.u32 %v533, 7
        %v535 = vsub.s32 0, %v534
        %v536 = vrot.slane %v286, %v535
        %v538 = vadd.f32 %v524, %v536
        %v539 = vadd.f32 %v525, %v536
        %v540 = vadd.f32 %v526, %v536
        %v541 = vadd.f32 %v527, %v536
        %v542 = vadd.f32 %v528, %v536
        %v543 = vadd.f32 %v529, %v536
        %v544 = vadd.f32 %v530, %v536
        %v545 = vadd.f32 %v531, %v536
        %v546 = vmul.f32 %v538, 0.5
        %v547 = vmul.f32 %v539, 0.5
        %v548 = vmul.f32 %v540, 0.5
        %v549 = vmul.f32 %v541, 0.5
        %v550 = vmul.f32 %v542, 0.5
        %v551 = vmul.f32 %v543, 0.5
        %v552 = vmul.f32 %v544, 0.5
        %v553 = vmul.f32 %v545, 0.5
        %v554 = vmul.f32 %v538, 0.70710677
        %v555 = vmul.f32 %v539, 0.70710677
        %v556 = vmul.f32 %v540, 0.70710677
        %v557 = vmul.f32 %v541, 0.70710677
        %v558 = vmul.f32 %v542, 0.70710677
        %v559 = vmul.f32 %v543, 0.70710677
        %v560 = vmul.f32 %v544, 0.70710677
        %v561 = vmul.f32 %v545, 0.70710677
        %v562 = verf.f32.pop %v554
        %v563 = verf.f32.pop %v555
        %v564 = verf.f32.pop %v556
        %v565 = verf.f32.pop %v557
        %v566 = verf.f32.pop %v558
        %v567 = verf.f32.pop %v559
        %v568 = verf.f32.pop %v560
        %v569 = verf.f32.pop %v561
        %v570 = vadd.f32 %v562, 1.0
        %v571 = vadd.f32 %v563, 1.0
        %v572 = vadd.f32 %v564, 1.0
        %v573 = vadd.f32 %v565, 1.0
        %v574 = vadd.f32 %v566, 1.0
        %v575 = vadd.f32 %v567, 1.0
        %v576 = vadd.f32 %v568, 1.0
        %v577 = vadd.f32 %v569, 1.0
        %v578 = vmul.f32 %v546, %v570
        %v579 = vmul.f32 %v547, %v571
        %v580 = vmul.f32 %v548, %v572
        %v581 = vmul.f32 %v549, %v573
        %v582 = vmul.f32 %v550, %v574
        %v583 = vmul.f32 %v551, %v575
        %v584 = vmul.f32 %v552, %v576
        %v585 = vmul.f32 %v553, %v577
        %586 = vst [vmem:[%s238] sm:$0xff] %v578
        %587 = vst [vmem:[%s238 + $0x8] sm:$0xff] %v579
        %588 = vst [vmem:[%s238 + $0x10] sm:$0xff] %v580
        %589 = vst [vmem:[%s238 + $0x18] sm:$0xff] %v581
        %590 = vst [vmem:[%s238 + $0x20] sm:$0xff] %v582
        %591 = vst [vmem:[%s238 + $0x28] sm:$0xff] %v583
        %592 = vst [vmem:[%s238 + $0x30] sm:$0xff] %v584
        %593 = vst [vmem:[%s238 + $0x38] sm:$0xff] %v585
        %s594 = sand.u32 %s123, 1
        %s595 = scalar_lea.sflag [#allocation5], %s594
        %s596 = sand.u32 %s123, 1
        %s597 = smul.addr %s596, 64
        %s598 = scalar_lea.vmem [#allocation8], %s597
        // Predicated region
        $region41: #{tpu_custom_call.1} parent=31 // pred_check
          %p599 = pneg %p133
        $region42: #{tpu_custom_call.1} parent=31 // pred_check_branch
          %601 = sbr.rel (%p599) target = $region44
        $region43: #{tpu_custom_call.1} parent=31 // pred_region
          %s603 = ssub.s32 1024, 1024
          %604 = vsyncadd %s595, %s603
          %s605 = smul.addr %s25, 8
          %s606 = sadd.s32 %s26, %s605
          %s607 = smul.addr %s606, 128
          %s608 = scalar_lea.hbm %s3, %s607
          %s609 = sshll.u32 %s598, 4
          %s610 = int_to_ptr.vmem [resolvable:$true] %s609
          %615 = dma.vmem_to_hbm [thread:$0]  %s610, 1024, %s608, %s595, 128, 128, 8
        $region44: #{tpu_custom_call.1} parent=31 // pred_fallthru
          _
      $region32: #{tpu_custom_call.1} parent=5 // pred_fallthru
        _
      %p616 = scmp.le.s32.totalorder 2, %s16
      // Predicated region
      $region45: #{tpu_custom_call.1} parent=5 // pred_check
        %p617 = pneg %p616
      $region46: #{tpu_custom_call.1} parent=5 // pred_check_branch
        %619 = sbr.rel (%p617) target = $region48
      $region47: #{tpu_custom_call.1} parent=5 // pred_region
        %s620 = ssub.s32 %s16, 2
        // Predicated region
        $region49: #{tpu_custom_call.1} parent=47 // pred_check
          %p621 = pneg %p139
        $region50: #{tpu_custom_call.1} parent=47 // pred_check_branch
          %623 = sbr.rel (%p621) target = $region52
        $region51: #{tpu_custom_call.1} parent=47 // pred_region
          %s624 = sand.u32 %s124, 1
          %s625 = scalar_lea.sflag [#allocation5], %s624
          %s626 = sand.u32 %s124, 1
          %s627 = smul.addr %s626, 64
          %s628 = scalar_lea.vmem [#allocation8], %s627
          %629 = dma.done %s625, 1024
        $region52: #{tpu_custom_call.1} parent=47 // pred_fallthru
          _
      $region48: #{tpu_custom_call.1} parent=5 // pred_fallthru
        _
    $region6: #{tpu_custom_call.1} parent=1 // loop_footer
      %s20 = sadd.s32 1, %s16
    $region7: #{tpu_custom_call.1} parent=1 // loop_footer_branch
      %15 = sbr.rel target = $region3
    $region8: #{tpu_custom_call.1} parent=1 // loop_exit
      _
    %630 = vsyncpa [#allocation4], 1
    %s631 = scalar_lea.sflag [#allocation4], 1
    %632 = vsyncpa %s631, 1
    %633 = vsyncpa [#allocation7], 1
    %634 = vsyncpa [#allocation5], 1
    %s635 = scalar_lea.sflag [#allocation5], 1
    %636 = vsyncpa %s635, 1

</llo_original>
